<compile_context>
chip_gen: v5e
topology: v5e:2x2
jax: 0.10.0
libtpu: 0.0.40
codegen_flags: <defaults>
</compile_context>

<pallas_src>
import functools

import jax
import jax.numpy as jnp
import numpy as np
from jax import lax
from jax.experimental import pallas as pl
from jax.experimental.pallas import tpu as pltpu


# ---------------------------------------------------------------------------
# Kernel 1: fused Q/K/V projections (Conv1d kernel_size=1), head-major output.
# Grid = (batch, n_tile).  Weights are pre-permuted to head-grouped row order
# and pre-cast to bf16; 1/sqrt(head_dim) is folded into wq/bq.
# ---------------------------------------------------------------------------
def _proj_kernel(q_ref, k_ref, v_ref,
                 wq_ref, bq_ref, wk_ref, bk_ref, wv_ref, bv_ref,
                 qp_ref, kp_ref, vp_ref, *, num_heads, head_dim):
    def project(w_ref, b_ref, x_ref, o_ref):
        # (d_model, d_model) bf16 @ (d_model, n_tile) bf16 -> f32, + bias.
        y = jnp.dot(w_ref[...], x_ref[...].astype(jnp.bfloat16),
                    preferred_element_type=jnp.float32) + b_ref[...]
        # Split head-grouped rows into a head-major 3D block (H, head_dim, n_tile).
        o_ref[...] = y.reshape(num_heads, head_dim, -1).astype(jnp.bfloat16)

    project(wq_ref, bq_ref, q_ref, qp_ref)
    project(wk_ref, bk_ref, k_ref, kp_ref)
    project(wv_ref, bv_ref, v_ref, vp_ref)


# ---------------------------------------------------------------------------
# Kernel 2: scaled-dot-product attention + fused merge Conv1d.
# Grid = (batch, q_tile, head); head (innermost, "arbitrary") carries the merge
# accumulation; batch and q_tile are "parallel" (megacore-shardable).
# ---------------------------------------------------------------------------
def _attn_kernel(qp_ref, kp_ref, vp_ref, wm_ref, bm_ref,
                 out_ref, prob_ref, macc_ref, *, num_heads, approx_recip):
    h = pl.program_id(2)

    q_h = qp_ref[...]        # (head_dim, TQ) bf16, already scaled by 1/sqrt(dim)
    k_h = kp_ref[...]        # (head_dim, N)  bf16
    v_h = vp_ref[...]        # (head_dim, N)  bf16

    # scores[n, m] = sum_d q_h[d, n] * k_h[d, m]   (f32 accumulate on the MXU)
    s = lax.dot_general(q_h, k_h, (((0,), (0,)), ((), ())),
                        preferred_element_type=jnp.float32)            # (TQ, N)
    s = s - jnp.max(s, axis=-1, keepdims=True)
    e = jnp.exp(s)
    # EUP reciprocal; approximate only when the prob output is bf16 anyway
    # (approx error ~1e-3 is below bf16 quantization).
    p = e * pl.reciprocal(jnp.sum(e, axis=-1, keepdims=True), approx=approx_recip)

    # Single bf16 cast reused for both the prob store and the PV matmul.
    p_lo = p.astype(jnp.bfloat16)
    prob_ref[...] = p_lo if prob_ref.dtype == jnp.bfloat16 else p.astype(prob_ref.dtype)

    # x_h[d, n] = sum_m p[n, m] * v_h[d, m]
    x_h = lax.dot_general(v_h, p_lo, (((1,), (1,)), ((), ())),
                          preferred_element_type=jnp.float32)           # (head_dim, TQ)

    # Per-head partial merge: out += wm[:, head cols] @ x_h  (f32 accumulator).
    @pl.when(h == 0)
    def _():
        macc_ref[...] = jnp.zeros_like(macc_ref)

    macc_ref[...] += jnp.dot(wm_ref[...], x_h.astype(jnp.bfloat16),
                             preferred_element_type=jnp.float32)

    @pl.when(h == num_heads - 1)
    def _():
        out_ref[...] = (macc_ref[...] + bm_ref[...]).astype(out_ref.dtype)


def multi_headed_attention(q, k, v, params, num_heads, *,
                           q_tile=None, prob_dtype=jnp.bfloat16):
    """Pallas implementation of MultiHeadedAttention.forward (with_W=True).

    prob_dtype: dtype of the returned softmax_qk. Defaults to bf16 (the O(N^2)
    prob writeback is the HBM-bound stream); pass jnp.float32 for bit-closer
    semantics to the PyTorch module.
    """
    wq, bq, wk, bk, wv, bv, wm, bm = params
    B, d_model, N = q.shape
    assert d_model % num_heads == 0
    head_dim = d_model // num_heads
    scale = 1.0 / (head_dim ** 0.5)

    # --- chip-aware VMEM budget / tile selection -------------------------------
    try:
        vmem_cap = int(getattr(pltpu.get_tpu_info(), "vmem_capacity_bytes",
                               64 * 1024 * 1024))
    except Exception:  # pragma: no cover - conservative fallback
        vmem_cap = 64 * 1024 * 1024
    vmem_limit = int(min(vmem_cap - 16 * 1024 * 1024, 100 * 1024 * 1024))
    big_vmem = vmem_cap >= 96 * 1024 * 1024          # v5e/v6e: 128 MiB; v7x: 64 MiB
    if q_tile is None:
        prefs = (1024, 512, 256, 128) if big_vmem else (256, 512, 128)
        q_tile = next((c for c in prefs if N % c == 0), N)
    assert N % q_tile == 0
    num_q_tiles = N // q_tile
    n_tile = next((c for c in (2048, 1024, 512, 256, 128) if N % c == 0), N)

    # --- fold PyTorch's view(B, head_dim, num_heads, N) channel order into the
    #     weights (head-grouped order r = h*head_dim + d), fold the 1/sqrt(dim)
    #     scale into wq/bq, pre-cast MXU operands to bf16. -----------------------
    def head_rows_w(w):      # permute *output* rows of a (d_model, d_model) weight
        return (w.reshape(head_dim, num_heads, d_model)
                 .transpose(1, 0, 2).reshape(d_model, d_model))

    def head_rows_b(b):      # (d_model,) -> (d_model, 1) in the same row order
        return b.reshape(head_dim, num_heads).transpose(1, 0).reshape(d_model, 1)

    wq_p = (head_rows_w(wq) * scale).astype(jnp.bfloat16)
    wk_p = head_rows_w(wk).astype(jnp.bfloat16)
    wv_p = head_rows_w(wv).astype(jnp.bfloat16)
    bq_p = head_rows_b(bq) * scale
    bk_p = head_rows_b(bk)
    bv_p = head_rows_b(bv)
    # merge weight split per head: wm_p[h, :, d] = wm[:, d * num_heads + h]
    wm_p = (wm.reshape(d_model, head_dim, num_heads)
              .transpose(2, 0, 1)).astype(jnp.bfloat16)
    bm_p = bm.reshape(d_model, 1)

    full2 = lambda *_: (0, 0)

    # --- kernel 1: fused Q/K/V projection --------------------------------------
    proj = pl.pallas_call(
        functools.partial(_proj_kernel, num_heads=num_heads, head_dim=head_dim),
        out_shape=tuple(
            jax.ShapeDtypeStruct((B, num_heads, head_dim, N), jnp.bfloat16)
            for _ in range(3)),
        grid_spec=pltpu.PrefetchScalarGridSpec(
            num_scalar_prefetch=0,
            grid=(B, N // n_tile),
            in_specs=[
                pl.BlockSpec((None, d_model, n_tile), lambda b, j: (b, 0, j)),  # q
                pl.BlockSpec((None, d_model, n_tile), lambda b, j: (b, 0, j)),  # k
                pl.BlockSpec((None, d_model, n_tile), lambda b, j: (b, 0, j)),  # v
                pl.BlockSpec((d_model, d_model), full2),   # wq (scaled)
                pl.BlockSpec((d_model, 1), full2),         # bq (scaled)
                pl.BlockSpec((d_model, d_model), full2),   # wk
                pl.BlockSpec((d_model, 1), full2),         # bk
                pl.BlockSpec((d_model, d_model), full2),   # wv
                pl.BlockSpec((d_model, 1), full2),         # bv
            ],
            out_specs=[
                pl.BlockSpec((None, num_heads, head_dim, n_tile),
                             lambda b, j: (b, 0, 0, j)) for _ in range(3)],
        ),
        compiler_params=pltpu.CompilerParams(
            dimension_semantics=("parallel", "parallel"),
            vmem_limit_bytes=vmem_limit),
    )
    qp, kp, vp = proj(q, k, v, wq_p, bq_p, wk_p, bk_p, wv_p, bv_p)

    # --- kernel 2: attention + fused merge --------------------------------------
    attn = pl.pallas_call(
        functools.partial(_attn_kernel, num_heads=num_heads,
                          approx_recip=(prob_dtype == jnp.bfloat16)),
        out_shape=(
            jax.ShapeDtypeStruct((B, d_model, N), jnp.float32),
            jax.ShapeDtypeStruct((B, num_heads, N, N), prob_dtype),
        ),
        grid_spec=pltpu.PrefetchScalarGridSpec(
            num_scalar_prefetch=0,
            grid=(B, num_q_tiles, num_heads),
            in_specs=[
                pl.BlockSpec((None, None, head_dim, q_tile),
                             lambda b, t, h: (b, h, 0, t)),       # q head slice
                pl.BlockSpec((None, None, head_dim, N),
                             lambda b, t, h: (b, h, 0, 0)),       # k head slice
                pl.BlockSpec((None, None, head_dim, N),
                             lambda b, t, h: (b, h, 0, 0)),       # v head slice
                pl.BlockSpec((None, d_model, head_dim),
                             lambda b, t, h: (h, 0, 0)),          # merge W, head cols
                pl.BlockSpec((d_model, 1), lambda b, t, h: (0, 0)),  # merge bias
            ],
            out_specs=[
                pl.BlockSpec((None, d_model, q_tile), lambda b, t, h: (b, 0, t)),
                pl.BlockSpec((None, None, q_tile, N), lambda b, t, h: (b, h, t, 0)),
            ],
            scratch_shapes=[pltpu.VMEM((d_model, q_tile), jnp.float32)],  # merge acc
        ),
        compiler_params=pltpu.CompilerParams(
            # head axis carries the merge accumulation -> arbitrary;
            # batch and q-tile are independent -> parallel (v7x megacore).
            dimension_semantics=("parallel", "parallel", "arbitrary"),
            vmem_limit_bytes=vmem_limit),
    )
    out, prob = attn(qp, kp, vp, wm_p, bm_p)
    return out, prob


def reference(q, k, v, params, num_heads):
    """Pure-JAX (f32) mirror of the PyTorch forward, for correctness checking."""
    wq, bq, wk, bk, wv, bv, wm, bm = params
    B, d_model, N = q.shape
    head_dim = d_model // num_heads

    def conv1(w, b, x):  # Conv1d(kernel_size=1)
        return jnp.einsum('oi,bin->bon', w, x) + b[None, :, None]

    qp = conv1(wq, bq, q).reshape(B, head_dim, num_heads, N)
    kp = conv1(wk, bk, k).reshape(B, head_dim, num_heads, N)
    vp = conv1(wv, bv, v).reshape(B, head_dim, num_heads, N)
    scores = jnp.einsum('bdhn,bdhm->bhnm', qp, kp) / (head_dim ** 0.5)
    prob = jax.nn.softmax(scores, axis=-1)
    x = jnp.einsum('bhnm,bdhm->bdhn', prob, vp)
    out = conv1(wm, bm, x.reshape(B, d_model, N))
    return out, prob


if __name__ == "__main__":
    B, d_model, N = 2, 32, 16
    num_heads = 4

    key = jax.random.PRNGKey(0)
    ks = jax.random.split(key, 11)
    bound = 1.0 / np.sqrt(d_model)   # PyTorch Conv1d default init range

    def w_init(k_):
        return jax.random.uniform(k_, (d_model, d_model), jnp.float32, -bound, bound)

    def b_init(k_):
        return jax.random.uniform(k_, (d_model,), jnp.float32, -bound, bound)

    params = (w_init(ks[0]), b_init(ks[1]),   # proj[0]  (query)
              w_init(ks[2]), b_init(ks[3]),   # proj[1]  (key)
              w_init(ks[4]), b_init(ks[5]),   # proj[2]  (value)
              w_init(ks[6]), b_init(ks[7]))   # merge

    q = jax.random.normal(ks[8], (B, d_model, N), jnp.float32)
    k = jax.random.normal(ks[9], (B, d_model, N), jnp.float32)
    v = jax.random.normal(ks[10], (B, d_model, N), jnp.float32)

    out, prob = multi_headed_attention(q, k, v, params, num_heads)
    jax.block_until_ready((out, prob))

    out_ref, prob_ref = reference(q, k, v, params, num_heads)
    # bf16 MXU operands + bf16 prob output -> compare against the f32 reference
    # with correspondingly loose (but bug-catching) tolerances.
    np.testing.assert_allclose(np.asarray(prob).astype(np.float32),
                               np.asarray(prob_ref), rtol=3e-2, atol=2e-2)
    np.testing.assert_allclose(np.asarray(out), np.asarray(out_ref),
                               rtol=5e-2, atol=5e-2)

    print("KERNEL_OK")
</pallas_src>

<mosaic_0001>
module attributes {stable_mosaic.version = 11 : i64} {
  func.func @_proj_kernel(%arg0: i32, %arg1: i32, %arg2: memref<1x32x16xf32, #tpu.memory_space<vmem>>, %arg3: memref<1x32x16xf32, #tpu.memory_space<vmem>>, %arg4: memref<1x32x16xf32, #tpu.memory_space<vmem>>, %arg5: memref<32x32xbf16, #tpu.memory_space<vmem>>, %arg6: memref<32x1xf32, #tpu.memory_space<vmem>>, %arg7: memref<32x32xbf16, #tpu.memory_space<vmem>>, %arg8: memref<32x1xf32, #tpu.memory_space<vmem>>, %arg9: memref<32x32xbf16, #tpu.memory_space<vmem>>, %arg10: memref<32x1xf32, #tpu.memory_space<vmem>>, %arg11: memref<1x4x8x16xbf16, #tpu.memory_space<vmem>>, %arg12: memref<1x4x8x16xbf16, #tpu.memory_space<vmem>>, %arg13: memref<1x4x8x16xbf16, #tpu.memory_space<vmem>>) attributes {dimension_semantics = [#tpu.dimension_semantics<parallel>, #tpu.dimension_semantics<parallel>], iteration_bounds = array<i64: 2, 1>, scalar_prefetch = 0 : i64, scratch_operands = 0 : i64, tpu.core_type = #tpu.core_type<tc>, window_params = [{transform_indices = @transform_0, window_bounds = array<i64: 1, 32, 16>}, {transform_indices = @transform_1, window_bounds = array<i64: 1, 32, 16>}, {transform_indices = @transform_2, window_bounds = array<i64: 1, 32, 16>}, {pipeline_mode = #tpu.pipeline_mode<synchronous>, transform_indices = @transform_3, window_bounds = array<i64: 32, 32>}, {pipeline_mode = #tpu.pipeline_mode<synchronous>, transform_indices = @transform_4, window_bounds = array<i64: 32, 1>}, {pipeline_mode = #tpu.pipeline_mode<synchronous>, transform_indices = @transform_5, window_bounds = array<i64: 32, 32>}, {pipeline_mode = #tpu.pipeline_mode<synchronous>, transform_indices = @transform_6, window_bounds = array<i64: 32, 1>}, {pipeline_mode = #tpu.pipeline_mode<synchronous>, transform_indices = @transform_7, window_bounds = array<i64: 32, 32>}, {pipeline_mode = #tpu.pipeline_mode<synchronous>, transform_indices = @transform_8, window_bounds = array<i64: 32, 1>}, {transform_indices = @transform_9, window_bounds = array<i64: 1, 4, 8, 16>}, {transform_indices = @transform_10, window_bounds = array<i64: 1, 4, 8, 16>}, {transform_indices = @transform_11, window_bounds = array<i64: 1, 4, 8, 16>}]} {
    %c0 = arith.constant 0 : index
    %c0_0 = arith.constant 0 : index
    %0 = vector.load %arg5[%c0, %c0_0] : memref<32x32xbf16, #tpu.memory_space<vmem>>, vector<32x32xbf16>
    %c0_1 = arith.constant 0 : index
    %c0_2 = arith.constant 0 : index
    %c0_3 = arith.constant 0 : index
    %1 = vector.load %arg2[%c0_1, %c0_2, %c0_3] : memref<1x32x16xf32, #tpu.memory_space<vmem>>, vector<1x32x16xf32>
    %2 = vector.shape_cast %1 : vector<1x32x16xf32> to vector<32x16xf32>
    %3 = arith.truncf %2 : vector<32x16xf32> to vector<32x16xbf16>
    %cst = arith.constant dense<0.000000e+00> : vector<32x16xf32>
    %4 = tpu.matmul %0, %3, %cst {dimension_numbers = #tpu.dot_dimension_numbers<[1], [0], [0], [1], [0, 0, 1, 1], [], []>} : vector<32x32xbf16>, vector<32x16xbf16>, vector<32x16xf32> -> vector<32x16xf32>
    %c0_4 = arith.constant 0 : index
    %c0_5 = arith.constant 0 : index
    %5 = vector.load %arg6[%c0_4, %c0_5] : memref<32x1xf32, #tpu.memory_space<vmem>>, vector<32x1xf32>
    %6 = vector.broadcast %5 : vector<32x1xf32> to vector<32x16xf32>
    %7 = arith.addf %4, %6 : vector<32x16xf32>
    %8 = vector.shape_cast %7 : vector<32x16xf32> to vector<4x8x16xf32>
    %9 = arith.truncf %8 : vector<4x8x16xf32> to vector<4x8x16xbf16>
    %c0_6 = arith.constant 0 : index
    %c0_7 = arith.constant 0 : index
    %c0_8 = arith.constant 0 : index
    %c0_9 = arith.constant 0 : index
    %10 = vector.load %arg11[%c0_6, %c0_7, %c0_8, %c0_9] : memref<1x4x8x16xbf16, #tpu.memory_space<vmem>>, vector<1x4x8x16xbf16>
    %11 = vector.shape_cast %10 : vector<1x4x8x16xbf16> to vector<4x8x16xbf16>
    %12 = vector.shape_cast %9 : vector<4x8x16xbf16> to vector<1x4x8x16xbf16>
    tpu.vector_store %arg11[%c0_6, %c0_7, %c0_8, %c0_9], %12 {strides = array<i32>} : memref<1x4x8x16xbf16, #tpu.memory_space<vmem>>, vector<1x4x8x16xbf16>,
    %c0_10 = arith.constant 0 : index
    %c0_11 = arith.constant 0 : index
    %13 = vector.load %arg7[%c0_10, %c0_11] : memref<32x32xbf16, #tpu.memory_space<vmem>>, vector<32x32xbf16>
    %c0_12 = arith.constant 0 : index
    %c0_13 = arith.constant 0 : index
    %c0_14 = arith.constant 0 : index
    %14 = vector.load %arg3[%c0_12, %c0_13, %c0_14] : memref<1x32x16xf32, #tpu.memory_space<vmem>>, vector<1x32x16xf32>
    %15 = vector.shape_cast %14 : vector<1x32x16xf32> to vector<32x16xf32>
    %16 = arith.truncf %15 : vector<32x16xf32> to vector<32x16xbf16>
    %cst_15 = arith.constant dense<0.000000e+00> : vector<32x16xf32>
    %17 = tpu.matmul %13, %16, %cst_15 {dimension_numbers = #tpu.dot_dimension_numbers<[1], [0], [0], [1], [0, 0, 1, 1], [], []>} : vector<32x32xbf16>, vector<32x16xbf16>, vector<32x16xf32> -> vector<32x16xf32>
    %c0_16 = arith.constant 0 : index
    %c0_17 = arith.constant 0 : index
    %18 = vector.load %arg8[%c0_16, %c0_17] : memref<32x1xf32, #tpu.memory_space<vmem>>, vector<32x1xf32>
    %19 = vector.broadcast %18 : vector<32x1xf32> to vector<32x16xf32>
    %20 = arith.addf %17, %19 : vector<32x16xf32>
    %21 = vector.shape_cast %20 : vector<32x16xf32> to vector<4x8x16xf32>
    %22 = arith.truncf %21 : vector<4x8x16xf32> to vector<4x8x16xbf16>
    %c0_18 = arith.constant 0 : index
    %c0_19 = arith.constant 0 : index
    %c0_20 = arith.constant 0 : index
    %c0_21 = arith.constant 0 : index
    %23 = vector.load %arg12[%c0_18, %c0_19, %c0_20, %c0_21] : memref<1x4x8x16xbf16, #tpu.memory_space<vmem>>, vector<1x4x8x16xbf16>
    %24 = vector.shape_cast %23 : vector<1x4x8x16xbf16> to vector<4x8x16xbf16>
    %25 = vector.shape_cast %22 : vector<4x8x16xbf16> to vector<1x4x8x16xbf16>
    tpu.vector_store %arg12[%c0_18, %c0_19, %c0_20, %c0_21], %25 {strides = array<i32>} : memref<1x4x8x16xbf16, #tpu.memory_space<vmem>>, vector<1x4x8x16xbf16>,
    %c0_22 = arith.constant 0 : index
    %c0_23 = arith.constant 0 : index
    %26 = vector.load %arg9[%c0_22, %c0_23] : memref<32x32xbf16, #tpu.memory_space<vmem>>, vector<32x32xbf16>
    %c0_24 = arith.constant 0 : index
    %c0_25 = arith.constant 0 : index
    %c0_26 = arith.constant 0 : index
    %27 = vector.load %arg4[%c0_24, %c0_25, %c0_26] : memref<1x32x16xf32, #tpu.memory_space<vmem>>, vector<1x32x16xf32>
    %28 = vector.shape_cast %27 : vector<1x32x16xf32> to vector<32x16xf32>
    %29 = arith.truncf %28 : vector<32x16xf32> to vector<32x16xbf16>
    %cst_27 = arith.constant dense<0.000000e+00> : vector<32x16xf32>
    %30 = tpu.matmul %26, %29, %cst_27 {dimension_numbers = #tpu.dot_dimension_numbers<[1], [0], [0], [1], [0, 0, 1, 1], [], []>} : vector<32x32xbf16>, vector<32x16xbf16>, vector<32x16xf32> -> vector<32x16xf32>
    %c0_28 = arith.constant 0 : index
    %c0_29 = arith.constant 0 : index
    %31 = vector.load %arg10[%c0_28, %c0_29] : memref<32x1xf32, #tpu.memory_space<vmem>>, vector<32x1xf32>
    %32 = vector.broadcast %31 : vector<32x1xf32> to vector<32x16xf32>
    %33 = arith.addf %30, %32 : vector<32x16xf32>
    %34 = vector.shape_cast %33 : vector<32x16xf32> to vector<4x8x16xf32>
    %35 = arith.truncf %34 : vector<4x8x16xf32> to vector<4x8x16xbf16>
    %c0_30 = arith.constant 0 : index
    %c0_31 = arith.constant 0 : index
    %c0_32 = arith.constant 0 : index
    %c0_33 = arith.constant 0 : index
    %36 = vector.load %arg13[%c0_30, %c0_31, %c0_32, %c0_33] : memref<1x4x8x16xbf16, #tpu.memory_space<vmem>>, vector<1x4x8x16xbf16>
    %37 = vector.shape_cast %36 : vector<1x4x8x16xbf16> to vector<4x8x16xbf16>
    %38 = vector.shape_cast %35 : vector<4x8x16xbf16> to vector<1x4x8x16xbf16>
    tpu.vector_store %arg13[%c0_30, %c0_31, %c0_32, %c0_33], %38 {strides = array<i32>} : memref<1x4x8x16xbf16, #tpu.memory_space<vmem>>, vector<1x4x8x16xbf16>,
    return
  }
  func.func @transform_0(%arg0: i32, %arg1: i32) -> (i32, i32, i32) {
    %c0_i32 = arith.constant 0 : i32
    %c0_i32_0 = arith.constant 0 : i32
    return %arg0, %c0_i32, %arg1 : i32, i32, i32
  }
  func.func @transform_1(%arg0: i32, %arg1: i32) -> (i32, i32, i32) {
    %c0_i32 = arith.constant 0 : i32
    %c0_i32_0 = arith.constant 0 : i32
    return %arg0, %c0_i32, %arg1 : i32, i32, i32
  }
  func.func @transform_2(%arg0: i32, %arg1: i32) -> (i32, i32, i32) {
    %c0_i32 = arith.constant 0 : i32
    %c0_i32_0 = arith.constant 0 : i32
    return %arg0, %c0_i32, %arg1 : i32, i32, i32
  }
  func.func @transform_3(%arg0: i32, %arg1: i32) -> (i32, i32) {
    %c0_i32 = arith.constant 0 : i32
    %c0_i32_0 = arith.constant 0 : i32
    %c0_i32_1 = arith.constant 0 : i32
    return %c0_i32, %c0_i32_0 : i32, i32
  }
  func.func @transform_4(%arg0: i32, %arg1: i32) -> (i32, i32) {
    %c0_i32 = arith.constant 0 : i32
    %c0_i32_0 = arith.constant 0 : i32
    %c0_i32_1 = arith.constant 0 : i32
    return %c0_i32, %c0_i32_0 : i32, i32
  }
  func.func @transform_5(%arg0: i32, %arg1: i32) -> (i32, i32) {
    %c0_i32 = arith.constant 0 : i32
    %c0_i32_0 = arith.constant 0 : i32
    %c0_i32_1 = arith.constant 0 : i32
    return %c0_i32, %c0_i32_0 : i32, i32
  }
  func.func @transform_6(%arg0: i32, %arg1: i32) -> (i32, i32) {
    %c0_i32 = arith.constant 0 : i32
    %c0_i32_0 = arith.constant 0 : i32
    %c0_i32_1 = arith.constant 0 : i32
    return %c0_i32, %c0_i32_0 : i32, i32
  }
  func.func @transform_7(%arg0: i32, %arg1: i32) -> (i32, i32) {
    %c0_i32 = arith.constant 0 : i32
    %c0_i32_0 = arith.constant 0 : i32
    %c0_i32_1 = arith.constant 0 : i32
    return %c0_i32, %c0_i32_0 : i32, i32
  }
  func.func @transform_8(%arg0: i32, %arg1: i32) -> (i32, i32) {
    %c0_i32 = arith.constant 0 : i32
    %c0_i32_0 = arith.constant 0 : i32
    %c0_i32_1 = arith.constant 0 : i32
    return %c0_i32, %c0_i32_0 : i32, i32
  }
  func.func @transform_9(%arg0: i32, %arg1: i32) -> (i32, i32, i32, i32) {
    %c0_i32 = arith.constant 0 : i32
    %c0_i32_0 = arith.constant 0 : i32
    %c0_i32_1 = arith.constant 0 : i32
    return %arg0, %c0_i32, %c0_i32_0, %arg1 : i32, i32, i32, i32
  }
  func.func @transform_10(%arg0: i32, %arg1: i32) -> (i32, i32, i32, i32) {
    %c0_i32 = arith.constant 0 : i32
    %c0_i32_0 = arith.constant 0 : i32
    %c0_i32_1 = arith.constant 0 : i32
    return %arg0, %c0_i32, %c0_i32_0, %arg1 : i32, i32, i32, i32
  }
  func.func @transform_11(%arg0: i32, %arg1: i32) -> (i32, i32, i32, i32) {
    %c0_i32 = arith.constant 0 : i32
    %c0_i32_0 = arith.constant 0 : i32
    %c0_i32_1 = arith.constant 0 : i32
    return %arg0, %c0_i32, %c0_i32_0, %arg1 : i32, i32, i32, i32
  }
}

</mosaic_0001>

<llo_original>
// kernel: tpu_custom_call.1
$region0: #{tpu_custom_call.1}
  #allocation0 [shape = 'u32[]', space=smem, size = 0x4, offset = 0x4, fixed_abs, tag = 'smem constant byte address 0x4 - core index']
  #allocation1 [shape = 'u32[72,128]{1,0:T(1,128)}', space=vmem, size = 0x9000, scoped, tag = 'internal scratch']
  %s0 = inlined_call_operand.vmem [shape: f32[2,32,16], index: 0, kind: input, shape index: {}]
  %s1 = inlined_call_operand.vmem [shape: f32[2,32,16], index: 1, kind: input, shape index: {}]
  %s2 = inlined_call_operand.vmem [shape: f32[2,32,16], index: 2, kind: input, shape index: {}]
  %s3 = inlined_call_operand.vmem [shape: bf16[32,32], index: 3, kind: input, shape index: {}]
  %s4 = inlined_call_operand.vmem [shape: f32[32,1], index: 4, kind: input, shape index: {}]
  %s5 = inlined_call_operand.vmem [shape: bf16[32,32], index: 5, kind: input, shape index: {}]
  %s6 = inlined_call_operand.vmem [shape: f32[32,1], index: 6, kind: input, shape index: {}]
  %s7 = inlined_call_operand.vmem [shape: bf16[32,32], index: 7, kind: input, shape index: {}]
  %s8 = inlined_call_operand.vmem [shape: f32[32,1], index: 8, kind: input, shape index: {}]
  %s9 = inlined_call_operand.hbm [shape: bf16[2,4,8,16], index: 9, kind: output, shape index: {0}]
  %s10 = inlined_call_operand.hbm [shape: bf16[2,4,8,16], index: 10, kind: output, shape index: {1}]
  %s11 = inlined_call_operand.hbm [shape: bf16[2,4,8,16], index: 11, kind: output, shape index: {2}]
  %12 = xla_tuple %s9, %s10, %s11
  %s13 = sld [smem:[#allocation0]]
  $region85: #{tpu_custom_call.1} parent=0
    _
  %s15 = ssub.s32 1, %s13
  %s16 = scalar_select 0, %s15, %s13
  $region1: #{tpu_custom_call.1} parent=0
    #allocation2 [shape = 'u8[16384]{0}', space=vmem, size = 0x4000, scoped, tag = 'output window, operand 0']
    #allocation3 [shape = 's32[2]{0}', space=sflag, size = 0x8, scoped, tag = 'scoped memory for tpu_custom_call.1']
    #allocation4 [shape = 'u8[16384]{0}', space=vmem, size = 0x4000, scoped, tag = 'output window, operand 1']
    #allocation5 [shape = 's32[2]{0}', space=sflag, size = 0x8, scoped, tag = 'scoped memory for tpu_custom_call.1']
    #allocation6 [shape = 'u8[16384]{0}', space=vmem, size = 0x4000, scoped, tag = 'output window, operand 2']
    %17 = vsyncpa [#allocation3], 0
    %s18 = scalar_lea.sflag [#allocation3], 1
    %19 = vsyncpa %s18, 0
    %20 = vsyncpa [#allocation5], 0
    %s21 = scalar_lea.sflag [#allocation5], 1
    %22 = vsyncpa %s21, 0
    loop: start=0, step=1, limit=4
    $region2: #{tpu_custom_call.1} parent=1 // loop_pre_header
      _
    $region3: #{tpu_custom_call.1} parent=1 // loop_header
      %s24 = sphi 0, %s28
      %p25 = scmp.ge.s32.totalorder %s24, 4
      %s31 = sphi 0, %s43
      %s32 = sphi 0, %s39
      %s33 = sphi 0, %s31
      %s34 = sphi 0, %s32
      %s35 = sphi 0, %s33
      %s36 = sphi 0, %s34
      %s48 = sphi 0, %s50
      %s51 = sphi 0, %s48
      %s52 = sphi 0, %s51
      %s68 = sphi 0, %s52
      %s76 = sphi 0, %s78
      %s79 = sphi 0, %s76
      %s80 = sphi 0, %s79
      %s96 = sphi 0, %s80
      %s104 = sphi 0, %s106
      %s107 = sphi 0, %s104
      %s108 = sphi 0, %s107
      %s124 = sphi 0, %s108
      %s128 = sphi 0, %s128
      %s130 = sphi 0, %s128
      %s131 = sphi 0, %s130
      %s145 = sphi 0, %s131
      %s149 = sphi 0, %s149
      %s151 = sphi 0, %s149
      %s152 = sphi 0, %s151
      %s166 = sphi 0, %s152
      %s170 = sphi 0, %s170
      %s172 = sphi 0, %s170
      %s173 = sphi 0, %s172
      %s187 = sphi 0, %s173
      %s191 = sphi 0, %s191
      %s193 = sphi 0, %s191
      %s194 = sphi 0, %s193
      %s208 = sphi 0, %s194
      %s212 = sphi 0, %s212
      %s214 = sphi 0, %s212
      %s215 = sphi 0, %s214
      %s229 = sphi 0, %s215
      %s233 = sphi 0, %s233
      %s235 = sphi 0, %s233
      %s236 = sphi 0, %s235
      %s250 = sphi 0, %s236
      %s258 = sphi 0, %s260
      %s261 = sphi 0, %s258
      %s262 = sphi 0, %s261
      %s278 = sphi 0, %s262
      %s286 = sphi 0, %s288
      %s289 = sphi 0, %s286
      %s290 = sphi 0, %s289
      %s306 = sphi 0, %s290
      %s314 = sphi 0, %s316
      %s317 = sphi 0, %s314
      %s318 = sphi 0, %s317
      %s334 = sphi 0, %s318
    $region4: #{tpu_custom_call.1} parent=1 // loop_header_branch
      %27 = sbr.rel (%p25) target = $region8
    $region5: #{tpu_custom_call.1} parent=1 // loop_body
      %s29 = ssub.s32 %s24, 1
      %s30 = ssub.s32 %s24, 2
      %s37 = sadd.s32 1, %s32
      %p38 = scmp.ge.s32.totalorder %s37, 1
      %s39 = scalar_select %p38, 0, %s37
      %s40 = sadd.s32 1, %s31
      %s41 = scalar_select %p38, %s40, %s31
      %p42 = scmp.ge.s32.totalorder %s41, 2
      %s43 = scalar_select %p42, 0, %s41
      %s44 = ssub.s32 %s31, %s43
      %s45 = ssub.s32 %s32, %s39
      %s46 = sor.u32 %s44, %s45
      %p47 = scmp.eq.s32.totalorder %s46, 0
      %s49 = sadd.s32 %s48, 1
      %s50 = scalar_select %p47, %s48, %s49
      %p53 = pneg %p47
      %p54 = scmp.eq.s32.totalorder %s24, 1
      %p55 = por %p53, %p54
      %p56 = scmp.ne.s32.totalorder %s48, %s51
      %p57 = scmp.eq.s32.totalorder %s24, 0
      %p58 = por %p56, %p57
      %p59 = scmp.ne.s32.totalorder %s48, %s51
      %p60 = scmp.eq.s32.totalorder %s29, 1
      %p61 = por %p59, %p60
      %p62 = scmp.ne.s32.totalorder %s51, %s52
      %p63 = scmp.eq.s32.totalorder %s29, 0
      %p64 = por %p62, %p63
      %p65 = scmp.ne.s32.totalorder %s51, %s52
      %p66 = scmp.eq.s32.totalorder %s30, 1
      %p67 = por %p65, %p66
      %p69 = scmp.ne.s32.totalorder %s52, %s68
      %p70 = scmp.eq.s32.totalorder %s30, 0
      %p71 = por %p69, %p70
      %s72 = ssub.s32 %s31, %s43
      %s73 = ssub.s32 %s32, %s39
      %s74 = sor.u32 %s72, %s73
      %p75 = scmp.eq.s32.totalorder %s74, 0
      %s77 = sadd.s32 %s76, 1
      %s78 = scalar_select %p75, %s76, %s77
      %p81 = pneg %p75
      %p82 = scmp.eq.s32.totalorder %s24, 1
      %p83 = por %p81, %p82
      %p84 = scmp.ne.s32.totalorder %s76, %s79
      %p85 = scmp.eq.s32.totalorder %s24, 0
      %p86 = por %p84, %p85
      %p87 = scmp.ne.s32.totalorder %s76, %s79
      %p88 = scmp.eq.s32.totalorder %s29, 1
      %p89 = por %p87, %p88
      %p90 = scmp.ne.s32.totalorder %s79, %s80
      %p91 = scmp.eq.s32.totalorder %s29, 0
      %p92 = por %p90, %p91
      %p93 = scmp.ne.s32.totalorder %s79, %s80
      %p94 = scmp.eq.s32.totalorder %s30, 1
      %p95 = por %p93, %p94
      %p97 = scmp.ne.s32.totalorder %s80, %s96
      %p98 = scmp.eq.s32.totalorder %s30, 0
      %p99 = por %p97, %p98
      %s100 = ssub.s32 %s31, %s43
      %s101 = ssub.s32 %s32, %s39
      %s102 = sor.u32 %s100, %s101
      %p103 = scmp.eq.s32.totalorder %s102, 0
      %s105 = sadd.s32 %s104, 1
      %s106 = scalar_select %p103, %s104, %s105
      %p109 = pneg %p103
      %p110 = scmp.eq.s32.totalorder %s24, 1
      %p111 = por %p109, %p110
      %p112 = scmp.ne.s32.totalorder %s104, %s107
      %p113 = scmp.eq.s32.totalorder %s24, 0
      %p114 = por %p112, %p113
      %p115 = scmp.ne.s32.totalorder %s104, %s107
      %p116 = scmp.eq.s32.totalorder %s29, 1
      %p117 = por %p115, %p116
      %p118 = scmp.ne.s32.totalorder %s107, %s108
      %p119 = scmp.eq.s32.totalorder %s29, 0
      %p120 = por %p118, %p119
      %p121 = scmp.ne.s32.totalorder %s107, %s108
      %p122 = scmp.eq.s32.totalorder %s30, 1
      %p123 = por %p121, %p122
      %p125 = scmp.ne.s32.totalorder %s108, %s124
      %p126 = scmp.eq.s32.totalorder %s30, 0
      %p127 = por %p125, %p126
      %s129 = sadd.s32 %s128, 1
      %p132 = scmp.eq.s32.totalorder %s24, 1
      %p133 = scmp.ne.s32.totalorder %s128, %s130
      %p134 = scmp.eq.s32.totalorder %s24, 0
      %p135 = por %p133, %p134
      %p136 = scmp.ne.s32.totalorder %s128, %s130
      %p137 = scmp.eq.s32.totalorder %s29, 1
      %p138 = por %p136, %p137
      %p139 = scmp.ne.s32.totalorder %s130, %s131
      %p140 = scmp.eq.s32.totalorder %s29, 0
      %p141 = por %p139, %p140
      %p142 = scmp.ne.s32.totalorder %s130, %s131
      %p143 = scmp.eq.s32.totalorder %s30, 1
      %p144 = por %p142, %p143
      %p146 = scmp.ne.s32.totalorder %s131, %s145
      %p147 = scmp.eq.s32.totalorder %s30, 0
      %p148 = por %p146, %p147
      %s150 = sadd.s32 %s149, 1
      %p153 = scmp.eq.s32.totalorder %s24, 1
      %p154 = scmp.ne.s32.totalorder %s149, %s151
      %p155 = scmp.eq.s32.totalorder %s24, 0
      %p156 = por %p154, %p155
      %p157 = scmp.ne.s32.totalorder %s149, %s151
      %p158 = scmp.eq.s32.totalorder %s29, 1
      %p159 = por %p157, %p158
      %p160 = scmp.ne.s32.totalorder %s151, %s152
      %p161 = scmp.eq.s32.totalorder %s29, 0
      %p162 = por %p160, %p161
      %p163 = scmp.ne.s32.totalorder %s151, %s152
      %p164 = scmp.eq.s32.totalorder %s30, 1
      %p165 = por %p163, %p164
      %p167 = scmp.ne.s32.totalorder %s152, %s166
      %p168 = scmp.eq.s32.totalorder %s30, 0
      %p169 = por %p167, %p168
      %s171 = sadd.s32 %s170, 1
      %p174 = scmp.eq.s32.totalorder %s24, 1
      %p175 = scmp.ne.s32.totalorder %s170, %s172
      %p176 = scmp.eq.s32.totalorder %s24, 0
      %p177 = por %p175, %p176
      %p178 = scmp.ne.s32.totalorder %s170, %s172
      %p179 = scmp.eq.s32.totalorder %s29, 1
      %p180 = por %p178, %p179
      %p181 = scmp.ne.s32.totalorder %s172, %s173
      %p182 = scmp.eq.s32.totalorder %s29, 0
      %p183 = por %p181, %p182
      %p184 = scmp.ne.s32.totalorder %s172, %s173
      %p185 = scmp.eq.s32.totalorder %s30, 1
      %p186 = por %p184, %p185
      %p188 = scmp.ne.s32.totalorder %s173, %s187
      %p189 = scmp.eq.s32.totalorder %s30, 0
      %p190 = por %p188, %p189
      %s192 = sadd.s32 %s191, 1
      %p195 = scmp.eq.s32.totalorder %s24, 1
      %p196 = scmp.ne.s32.totalorder %s191, %s193
      %p197 = scmp.eq.s32.totalorder %s24, 0
      %p198 = por %p196, %p197
      %p199 = scmp.ne.s32.totalorder %s191, %s193
      %p200 = scmp.eq.s32.totalorder %s29, 1
      %p201 = por %p199, %p200
      %p202 = scmp.ne.s32.totalorder %s193, %s194
      %p203 = scmp.eq.s32.totalorder %s29, 0
      %p204 = por %p202, %p203
      %p205 = scmp.ne.s32.totalorder %s193, %s194
      %p206 = scmp.eq.s32.totalorder %s30, 1
      %p207 = por %p205, %p206
      %p209 = scmp.ne.s32.totalorder %s194, %s208
      %p210 = scmp.eq.s32.totalorder %s30, 0
      %p211 = por %p209, %p210
      %s213 = sadd.s32 %s212, 1
      %p216 = scmp.eq.s32.totalorder %s24, 1
      %p217 = scmp.ne.s32.totalorder %s212, %s214
      %p218 = scmp.eq.s32.totalorder %s24, 0
      %p219 = por %p217, %p218
      %p220 = scmp.ne.s32.totalorder %s212, %s214
      %p221 = scmp.eq.s32.totalorder %s29, 1
      %p222 = por %p220, %p221
      %p223 = scmp.ne.s32.totalorder %s214, %s215
      %p224 = scmp.eq.s32.totalorder %s29, 0
      %p225 = por %p223, %p224
      %p226 = scmp.ne.s32.totalorder %s214, %s215
      %p227 = scmp.eq.s32.totalorder %s30, 1
      %p228 = por %p226, %p227
      %p230 = scmp.ne.s32.totalorder %s215, %s229
      %p231 = scmp.eq.s32.totalorder %s30, 0
      %p232 = por %p230, %p231
      %s234 = sadd.s32 %s233, 1
      %p237 = scmp.eq.s32.totalorder %s24, 1
      %p238 = scmp.ne.s32.totalorder %s233, %s235
      %p239 = scmp.eq.s32.totalorder %s24, 0
      %p240 = por %p238, %p239
      %p241 = scmp.ne.s32.totalorder %s233, %s235
      %p242 = scmp.eq.s32.totalorder %s29, 1
      %p243 = por %p241, %p242
      %p244 = scmp.ne.s32.totalorder %s235, %s236
      %p245 = scmp.eq.s32.totalorder %s29, 0
      %p246 = por %p244, %p245
      %p247 = scmp.ne.s32.totalorder %s235, %s236
      %p248 = scmp.eq.s32.totalorder %s30, 1
      %p249 = por %p247, %p248
      %p251 = scmp.ne.s32.totalorder %s236, %s250
      %p252 = scmp.eq.s32.totalorder %s30, 0
      %p253 = por %p251, %p252
      %s254 = ssub.s32 %s31, %s43
      %s255 = ssub.s32 %s32, %s39
      %s256 = sor.u32 %s254, %s255
      %p257 = scmp.eq.s32.totalorder %s256, 0
      %s259 = sadd.s32 %s258, 1
      %s260 = scalar_select %p257, %s258, %s259
      %p263 = pneg %p257
      %p264 = scmp.eq.s32.totalorder %s24, 1
      %p265 = por %p263, %p264
      %p266 = scmp.ne.s32.totalorder %s258, %s261
      %p267 = scmp.eq.s32.totalorder %s24, 0
      %p268 = por %p266, %p267
      %p269 = scmp.ne.s32.totalorder %s258, %s261
      %p270 = scmp.eq.s32.totalorder %s29, 1
      %p271 = por %p269, %p270
      %p272 = scmp.ne.s32.totalorder %s261, %s262
      %p273 = scmp.eq.s32.totalorder %s29, 0
      %p274 = por %p272, %p273
      %p275 = scmp.ne.s32.totalorder %s261, %s262
      %p276 = scmp.eq.s32.totalorder %s30, 1
      %p277 = por %p275, %p276
      %p279 = scmp.ne.s32.totalorder %s262, %s278
      %p280 = scmp.eq.s32.totalorder %s30, 0
      %p281 = por %p279, %p280
      %s282 = ssub.s32 %s31, %s43
      %s283 = ssub.s32 %s32, %s39
      %s284 = sor.u32 %s282, %s283
      %p285 = scmp.eq.s32.totalorder %s284, 0
      %s287 = sadd.s32 %s286, 1
      %s288 = scalar_select %p285, %s286, %s287
      %p291 = pneg %p285
      %p292 = scmp.eq.s32.totalorder %s24, 1
      %p293 = por %p291, %p292
      %p294 = scmp.ne.s32.totalorder %s286, %s289
      %p295 = scmp.eq.s32.totalorder %s24, 0
      %p296 = por %p294, %p295
      %p297 = scmp.ne.s32.totalorder %s286, %s289
      %p298 = scmp.eq.s32.totalorder %s29, 1
      %p299 = por %p297, %p298
      %p300 = scmp.ne.s32.totalorder %s289, %s290
      %p301 = scmp.eq.s32.totalorder %s29, 0
      %p302 = por %p300, %p301
      %p303 = scmp.ne.s32.totalorder %s289, %s290
      %p304 = scmp.eq.s32.totalorder %s30, 1
      %p305 = por %p303, %p304
      %p307 = scmp.ne.s32.totalorder %s290, %s306
      %p308 = scmp.eq.s32.totalorder %s30, 0
      %p309 = por %p307, %p308
      %s310 = ssub.s32 %s31, %s43
      %s311 = ssub.s32 %s32, %s39
      %s312 = sor.u32 %s310, %s311
      %p313 = scmp.eq.s32.totalorder %s312, 0
      %s315 = sadd.s32 %s314, 1
      %s316 = scalar_select %p313, %s314, %s315
      %p319 = pneg %p313
      %p320 = scmp.eq.s32.totalorder %s24, 1
      %p321 = por %p319, %p320
      %p322 = scmp.ne.s32.totalorder %s314, %s317
      %p323 = scmp.eq.s32.totalorder %s24, 0
      %p324 = por %p322, %p323
      %p325 = scmp.ne.s32.totalorder %s314, %s317
      %p326 = scmp.eq.s32.totalorder %s29, 1
      %p327 = por %p325, %p326
      %p328 = scmp.ne.s32.totalorder %s317, %s318
      %p329 = scmp.eq.s32.totalorder %s29, 0
      %p330 = por %p328, %p329
      %p331 = scmp.ne.s32.totalorder %s317, %s318
      %p332 = scmp.eq.s32.totalorder %s30, 1
      %p333 = por %p331, %p332
      %p335 = scmp.ne.s32.totalorder %s318, %s334
      %p336 = scmp.eq.s32.totalorder %s30, 0
      %p337 = por %p335, %p336
      %p338 = scmp.le.s32.totalorder 1, %s24
      %p339 = scmp.lt.s32.totalorder %s24, 3
      %p340 = pnand %p338, %p339
      %p341 = pneg %p340
      // Predicated region
      $region9: #{tpu_custom_call.1} parent=5 // pred_check
        _
      $region10: #{tpu_custom_call.1} parent=5 // pred_check_branch
        %343 = sbr.rel (%p340) target = $region12
      $region11: #{tpu_custom_call.1} parent=5 // pred_region
        %s344 = ssub.s32 %s24, 1
        // Predicated region
        $region13: #{tpu_custom_call.1} parent=11 // pred_check
          %p345 = pneg %p141
        $region14: #{tpu_custom_call.1} parent=11 // pred_check_branch
          %347 = sbr.rel (%p345) target = $region16
        $region15: #{tpu_custom_call.1} parent=11 // pred_region
          _
        $region16: #{tpu_custom_call.1} parent=11 // pred_fallthru
          _
        // Predicated region
        $region17: #{tpu_custom_call.1} parent=11 // pred_check
          %p348 = pneg %p162
        $region18: #{tpu_custom_call.1} parent=11 // pred_check_branch
          %350 = sbr.rel (%p348) target = $region20
        $region19: #{tpu_custom_call.1} parent=11 // pred_region
          _
        $region20: #{tpu_custom_call.1} parent=11 // pred_fallthru
          _
        // Predicated region
        $region21: #{tpu_custom_call.1} parent=11 // pred_check
          %p351 = pneg %p183
        $region22: #{tpu_custom_call.1} parent=11 // pred_check_branch
          %353 = sbr.rel (%p351) target = $region24
        $region23: #{tpu_custom_call.1} parent=11 // pred_region
          _
        $region24: #{tpu_custom_call.1} parent=11 // pred_fallthru
          _
        // Predicated region
        $region25: #{tpu_custom_call.1} parent=11 // pred_check
          %p354 = pneg %p204
        $region26: #{tpu_custom_call.1} parent=11 // pred_check_branch
          %356 = sbr.rel (%p354) target = $region28
        $region27: #{tpu_custom_call.1} parent=11 // pred_region
          _
        $region28: #{tpu_custom_call.1} parent=11 // pred_fallthru
          _
        // Predicated region
        $region29: #{tpu_custom_call.1} parent=11 // pred_check
          %p357 = pneg %p225
        $region30: #{tpu_custom_call.1} parent=11 // pred_check_branch
          %359 = sbr.rel (%p357) target = $region32
        $region31: #{tpu_custom_call.1} parent=11 // pred_region
          _
        $region32: #{tpu_custom_call.1} parent=11 // pred_fallthru
          _
        // Predicated region
        $region33: #{tpu_custom_call.1} parent=11 // pred_check
          %p360 = pneg %p246
        $region34: #{tpu_custom_call.1} parent=11 // pred_check_branch
          %362 = sbr.rel (%p360) target = $region36
        $region35: #{tpu_custom_call.1} parent=11 // pred_region
          _
        $region36: #{tpu_custom_call.1} parent=11 // pred_fallthru
          _
      $region12: #{tpu_custom_call.1} parent=5 // pred_fallthru
        _
      %p363 = scmp.lt.s32.totalorder %s24, 2
      // Predicated region
      $region37: #{tpu_custom_call.1} parent=5 // pred_check
        %p364 = pneg %p363
      $region38: #{tpu_custom_call.1} parent=5 // pred_check_branch
        %366 = sbr.rel (%p364) target = $region40
      $region39: #{tpu_custom_call.1} parent=5 // pred_region
        // Predicated region
        $region41: #{tpu_custom_call.1} parent=39 // pred_check
          %p367 = pneg %p58
        $region42: #{tpu_custom_call.1} parent=39 // pred_check_branch
          %369 = sbr.rel (%p367) target = $region44
        $region43: #{tpu_custom_call.1} parent=39 // pred_region
          %p370 = scmp.lt.s32.totalorder %s31, 1
          %s371 = scalar_select %p370, %s31, 1
          %p372 = scmp.lt.s32.totalorder %s32, 0
          %s373 = scalar_select %p372, %s32, 0
          %s374 = smul.addr %s371, 4
          %s375 = sadd.s32 %s373, %s374
          %s376 = smul.addr %s375, 8
          %s377 = scalar_lea.vmem %s0, %s376
        $region44: #{tpu_custom_call.1} parent=39 // pred_fallthru
          _
        // Predicated region
        $region45: #{tpu_custom_call.1} parent=39 // pred_check
          %p378 = pneg %p86
        $region46: #{tpu_custom_call.1} parent=39 // pred_check_branch
          %380 = sbr.rel (%p378) target = $region48
        $region47: #{tpu_custom_call.1} parent=39 // pred_region
          %p381 = scmp.lt.s32.totalorder %s31, 1
          %s382 = scalar_select %p381, %s31, 1
          %p383 = scmp.lt.s32.totalorder %s32, 0
          %s384 = scalar_select %p383, %s32, 0
          %s385 = smul.addr %s382, 4
          %s386 = sadd.s32 %s384, %s385
          %s387 = smul.addr %s386, 8
          %s388 = scalar_lea.vmem %s1, %s387
        $region48: #{tpu_custom_call.1} parent=39 // pred_fallthru
          _
        // Predicated region
        $region49: #{tpu_custom_call.1} parent=39 // pred_check
          %p389 = pneg %p114
        $region50: #{tpu_custom_call.1} parent=39 // pred_check_branch
          %391 = sbr.rel (%p389) target = $region52
        $region51: #{tpu_custom_call.1} parent=39 // pred_region
          %p392 = scmp.lt.s32.totalorder %s31, 1
          %s393 = scalar_select %p392, %s31, 1
          %p394 = scmp.lt.s32.totalorder %s32, 0
          %s395 = scalar_select %p394, %s32, 0
          %s396 = smul.addr %s393, 4
          %s397 = sadd.s32 %s395, %s396
          %s398 = smul.addr %s397, 8
          %s399 = scalar_lea.vmem %s2, %s398
        $region52: #{tpu_custom_call.1} parent=39 // pred_fallthru
          _
      $region40: #{tpu_custom_call.1} parent=5 // pred_fallthru
        _
      %p400 = scmp.le.s32.totalorder 1, %s24
      %p401 = scmp.lt.s32.totalorder %s24, 3
      %p402 = pnand %p400, %p401
      %p403 = pneg %p402
      // Predicated region
      $region53: #{tpu_custom_call.1} parent=5 // pred_check
        _
      $region54: #{tpu_custom_call.1} parent=5 // pred_check_branch
        %405 = sbr.rel (%p402) target = $region56
      $region55: #{tpu_custom_call.1} parent=5 // pred_region
        %s406 = ssub.s32 %s24, 1
        %p407 = scmp.lt.s32.totalorder %s33, 1
        %s408 = scalar_select %p407, %s33, 1
        %p409 = scmp.lt.s32.totalorder %s34, 0
        %s410 = scalar_select %p409, %s34, 0
        %s411 = smul.addr %s408, 4
        %s412 = sadd.s32 %s410, %s411
        %s413 = smul.addr %s412, 8
        %s414 = scalar_lea.vmem %s0, %s413
        %p415 = pneg %p64
        %p416 = pneg %p61
        %p417 = scmp.lt.s32.totalorder %s33, 1
        %s418 = scalar_select %p417, %s33, 1
        %p419 = scmp.lt.s32.totalorder %s34, 0
        %s420 = scalar_select %p419, %s34, 0
        %s421 = smul.addr %s418, 4
        %s422 = sadd.s32 %s420, %s421
        %s423 = smul.addr %s422, 8
        %s424 = scalar_lea.vmem %s1, %s423
        %p425 = pneg %p92
        %p426 = pneg %p89
        %p427 = scmp.lt.s32.totalorder %s33, 1
        %s428 = scalar_select %p427, %s33, 1
        %p429 = scmp.lt.s32.totalorder %s34, 0
        %s430 = scalar_select %p429, %s34, 0
        %s431 = smul.addr %s428, 4
        %s432 = sadd.s32 %s430, %s431
        %s433 = smul.addr %s432, 8
        %s434 = scalar_lea.vmem %s2, %s433
        %p435 = pneg %p120
        %p436 = pneg %p117
        %p437 = pneg %p141
        %p438 = pneg %p138
        %p439 = pneg %p162
        %p440 = pneg %p159
        %p441 = pneg %p183
        %p442 = pneg %p180
        %p443 = pneg %p204
        %p444 = pneg %p201
        %p445 = pneg %p225
        %p446 = pneg %p222
        %p447 = pneg %p246
        %p448 = pneg %p243
        %p449 = pneg %p274
        %p450 = pneg %p271
        %s451 = sand.u32 %s261, 1
        %s452 = scalar_lea.sflag [#allocation3], %s451
        %s453 = sand.u32 %s261, 1
        %s454 = smul.addr %s453, 16
        %s455 = scalar_lea.vmem [#allocation2], %s454
        %p456 = pneg %p302
        %p457 = pneg %p299
        %s458 = sand.u32 %s29, 1
        %s459 = scalar_lea.sflag [#allocation5], %s458
        %s460 = sand.u32 %s289, 1
        %s461 = smul.addr %s460, 16
        %s462 = scalar_lea.vmem [#allocation4], %s461
        %p463 = pneg %p330
        %p464 = pneg %p327
        %s465 = sand.u32 %s29, 1
        %s466 = scalar_lea.sflag [#allocation5], %s465
        %s467 = sand.u32 %s317, 1
        %s468 = smul.addr %s467, 16
        %s469 = scalar_lea.vmem [#allocation6], %s468
        %p470 = scmp.lt.s32.totalorder %s33, 1
        %s471 = scalar_select %p470, %s33, 1
        %p472 = scmp.lt.s32.totalorder %s34, 0
        %s473 = scalar_select %p472, %s34, 0
        %s474 = smul.addr %s471, 4
        %s475 = sadd.s32 %s473, %s474
        %s476 = smul.addr %s475, 8
        %s477 = scalar_lea.vmem %s0, %s476
        %p478 = scmp.lt.s32.totalorder %s33, 1
        %s479 = scalar_select %p478, %s33, 1
        %p480 = scmp.lt.s32.totalorder %s34, 0
        %s481 = scalar_select %p480, %s34, 0
        %s482 = smul.addr %s479, 4
        %s483 = sadd.s32 %s481, %s482
        %s484 = smul.addr %s483, 8
        %s485 = scalar_lea.vmem %s1, %s484
        %p486 = scmp.lt.s32.totalorder %s33, 1
        %s487 = scalar_select %p486, %s33, 1
        %p488 = scmp.lt.s32.totalorder %s34, 0
        %s489 = scalar_select %p488, %s34, 0
        %s490 = smul.addr %s487, 4
        %s491 = sadd.s32 %s489, %s490
        %s492 = smul.addr %s491, 8
        %s493 = scalar_lea.vmem %s2, %s492
        %v495 = vld [vmem:[%s3] sm:$0xf]
        %v496 = vld [vmem:[%s3 + $0x4] sm:$0xf]
        %v497 = vld [vmem:[%s3 + $0x8] sm:$0xf]
        %v498 = vld [vmem:[%s3 + $0xc] sm:$0xf]
        %v499 = vld [vmem:[%s477] sm:$0xff]
        %v500 = vld [vmem:[%s477 + $0x8] sm:$0xff]
        %v501 = vld [vmem:[%s477 + $0x10] sm:$0xff]
        %v502 = vld [vmem:[%s477 + $0x18] sm:$0xff]
        %v503 = vpack.c.bf16 %v500, %v499
        %v504 = vpack.c.bf16 %v502, %v501
        %v505 = vld [vmem:[%s4] sm:$0xff]
        %v506 = vld [vmem:[%s4 + $0x8] sm:$0xff]
        %v507 = vld [vmem:[%s4 + $0x10] sm:$0xff]
        %v508 = vld [vmem:[%s4 + $0x18] sm:$0xff]
        %510 = vset.pattern.permute.xlu0 0
        %511 = vperm.xlu0 %510, %v505
        %v512 = vpop.permute.xlu0 %511
        %515 = vset.pattern.permute.xlu0 0
        %516 = vperm.xlu0 %515, %v506
        %v517 = vpop.permute.xlu0 %516
        %520 = vset.pattern.permute.xlu0 0
        %521 = vperm.xlu0 %520, %v507
        %v522 = vpop.permute.xlu0 %521
        %525 = vset.pattern.permute.xlu0 0
        %526 = vperm.xlu0 %525, %v508
        %v527 = vpop.permute.xlu0 %526
        %v533 = vunpack.c.l.b16 %v495
        %v534 = vunpack.c.l.b16 %v496
        %v535 = vunpack.c.l.b16 %v497
        %v536 = vunpack.c.l.b16 %v498
        %v537 = vpack.c.b16 %v534, %v533
        %v538 = vpack.c.b16 %v536, %v535
        %vm539 = vcmask 261120
        %v541 = vsel %vm539, %v537, 0
        %v544 = vsel %vm539, %v538, 0
        %546 = vmatpush.bf16.msra.mxu0 0
        %547 = vmatpush.bf16.msra.mxu0 0
        %548 = vmatpush.bf16.msra.mxu0 0
        %549 = vmatpush.bf16.msra.mxu0 0
        %550 = vmatpush.bf16.msra.mxu0 0
        %551 = vmatpush.bf16.msra.mxu0 0
        %552 = vmatpush.bf16.msra.mxu0 %v504
        %553 = vmatpush.bf16.msra.mxu0 %v503
        %554 = vmatmul.bf16.gmra.mxu0 %v541
        %v555 = vpop.f32.mrf.mxu0
        %v556 = vadd.f32 %v512, %v555
        %v557 = vpop.f32.mrf.mxu0
        %v558 = vadd.f32 %v517, %v557
        %559 = vmatmul.bf16.gmra.mxu0 %v544
        %v560 = vpop.f32.mrf.mxu0
        %v561 = vadd.f32 %v522, %v560
        %v562 = vpop.f32.mrf.mxu0
        %v563 = vadd.f32 %v527, %v562
        %564 = vdwg.mxu0
        %v565 = vpack.c.bf16 %v556, %v556
        %v566 = vpack.c.bf16 %v558, %v558
        %v567 = vpack.c.bf16 %v561, %v561
        %v568 = vpack.c.bf16 %v563, %v563
        %vm569 = vcmask 125952
        %570 = vst.msk [vmem:[%s455] sm:$0xf] %vm569, %v565
        %571 = vst.msk [vmem:[%s455 + $0x4] sm:$0xf] %vm569, %v566
        %572 = vst.msk [vmem:[%s455 + $0x8] sm:$0xf] %vm569, %v567
        %573 = vst.msk [vmem:[%s455 + $0xc] sm:$0xf] %vm569, %v568
        %v574 = vld [vmem:[%s5] sm:$0xf]
        %v575 = vld [vmem:[%s5 + $0x4] sm:$0xf]
        %v576 = vld [vmem:[%s5 + $0x8] sm:$0xf]
        %v577 = vld [vmem:[%s5 + $0xc] sm:$0xf]
        %v578 = vld [vmem:[%s485] sm:$0xff]
        %v579 = vld [vmem:[%s485 + $0x8] sm:$0xff]
        %v580 = vld [vmem:[%s485 + $0x10] sm:$0xff]
        %v581 = vld [vmem:[%s485 + $0x18] sm:$0xff]
        %v582 = vpack.c.bf16 %v579, %v578
        %v583 = vpack.c.bf16 %v581, %v580
        %v584 = vld [vmem:[%s6] sm:$0xff]
        %v585 = vld [vmem:[%s6 + $0x8] sm:$0xff]
        %v586 = vld [vmem:[%s6 + $0x10] sm:$0xff]
        %v587 = vld [vmem:[%s6 + $0x18] sm:$0xff]
        %589 = vset.pattern.permute.xlu0 0
        %590 = vperm.xlu0 %589, %v584
        %v591 = vpop.permute.xlu0 %590
        %594 = vset.pattern.permute.xlu0 0
        %595 = vperm.xlu0 %594, %v585
        %v596 = vpop.permute.xlu0 %595
        %599 = vset.pattern.permute.xlu0 0
        %600 = vperm.xlu0 %599, %v586
        %v601 = vpop.permute.xlu0 %600
        %604 = vset.pattern.permute.xlu0 0
        %605 = vperm.xlu0 %604, %v587
        %v606 = vpop.permute.xlu0 %605
        %v612 = vunpack.c.l.b16 %v574
        %v613 = vunpack.c.l.b16 %v575
        %v614 = vunpack.c.l.b16 %v576
        %v615 = vunpack.c.l.b16 %v577
        %v616 = vpack.c.b16 %v613, %v612
        %v617 = vpack.c.b16 %v615, %v614
        %v619 = vsel %vm539, %v616, 0
        %v622 = vsel %vm539, %v617, 0
        %624 = vmatpush.bf16.msra.mxu0 0
        %625 = vmatpush.bf16.msra.mxu0 0
        %626 = vmatpush.bf16.msra.mxu0 0
        %627 = vmatpush.bf16.msra.mxu0 0
        %628 = vmatpush.bf16.msra.mxu0 0
        %629 = vmatpush.bf16.msra.mxu0 0
        %630 = vmatpush.bf16.msra.mxu0 %v583
        %631 = vmatpush.bf16.msra.mxu0 %v582
        %632 = vmatmul.bf16.gmra.mxu0 %v619
        %v633 = vpop.f32.mrf.mxu0
        %v634 = vadd.f32 %v591, %v633
        %v635 = vpop.f32.mrf.mxu0
        %v636 = vadd.f32 %v596, %v635
        %637 = vmatmul.bf16.gmra.mxu0 %v622
        %v638 = vpop.f32.mrf.mxu0
        %v639 = vadd.f32 %v601, %v638
        %v640 = vpop.f32.mrf.mxu0
        %v641 = vadd.f32 %v606, %v640
        %642 = vdwg.mxu0
        %v643 = vpack.c.bf16 %v634, %v634
        %v644 = vpack.c.bf16 %v636, %v636
        %v645 = vpack.c.bf16 %v639, %v639
        %v646 = vpack.c.bf16 %v641, %v641
        %647 = vst.msk [vmem:[%s462] sm:$0xf] %vm569, %v643
        %648 = vst.msk [vmem:[%s462 + $0x4] sm:$0xf] %vm569, %v644
        %649 = vst.msk [vmem:[%s462 + $0x8] sm:$0xf] %vm569, %v645
        %650 = vst.msk [vmem:[%s462 + $0xc] sm:$0xf] %vm569, %v646
        %v651 = vld [vmem:[%s7] sm:$0xf]
        %v652 = vld [vmem:[%s7 + $0x4] sm:$0xf]
        %v653 = vld [vmem:[%s7 + $0x8] sm:$0xf]
        %v654 = vld [vmem:[%s7 + $0xc] sm:$0xf]
        %v655 = vld [vmem:[%s493] sm:$0xff]
        %v656 = vld [vmem:[%s493 + $0x8] sm:$0xff]
        %v657 = vld [vmem:[%s493 + $0x10] sm:$0xff]
        %v658 = vld [vmem:[%s493 + $0x18] sm:$0xff]
        %v659 = vpack.c.bf16 %v656, %v655
        %v660 = vpack.c.bf16 %v658, %v657
        %v661 = vld [vmem:[%s8] sm:$0xff]
        %v662 = vld [vmem:[%s8 + $0x8] sm:$0xff]
        %v663 = vld [vmem:[%s8 + $0x10] sm:$0xff]
        %v664 = vld [vmem:[%s8 + $0x18] sm:$0xff]
        %666 = vset.pattern.permute.xlu0 0
        %667 = vperm.xlu0 %666, %v661
        %v668 = vpop.permute.xlu0 %667
        %671 = vset.pattern.permute.xlu0 0
        %672 = vperm.xlu0 %671, %v662
        %v673 = vpop.permute.xlu0 %672
        %676 = vset.pattern.permute.xlu0 0
        %677 = vperm.xlu0 %676, %v663
        %v678 = vpop.permute.xlu0 %677
        %681 = vset.pattern.permute.xlu0 0
        %682 = vperm.xlu0 %681, %v664
        %v683 = vpop.permute.xlu0 %682
        %v689 = vunpack.c.l.b16 %v651
        %v690 = vunpack.c.l.b16 %v652
        %v691 = vunpack.c.l.b16 %v653
        %v692 = vunpack.c.l.b16 %v654
        %v693 = vpack.c.b16 %v690, %v689
        %v694 = vpack.c.b16 %v692, %v691
        %v696 = vsel %vm539, %v693, 0
        %v699 = vsel %vm539, %v694, 0
        %701 = vmatpush.bf16.msra.mxu0 0
        %702 = vmatpush.bf16.msra.mxu0 0
        %703 = vmatpush.bf16.msra.mxu0 0
        %704 = vmatpush.bf16.msra.mxu0 0
        %705 = vmatpush.bf16.msra.mxu0 0
        %706 = vmatpush.bf16.msra.mxu0 0
        %707 = vmatpush.bf16.msra.mxu0 %v660
        %708 = vmatpush.bf16.msra.mxu0 %v659
        %709 = vmatmul.bf16.gmra.mxu0 %v696
        %v710 = vpop.f32.mrf.mxu0
        %v711 = vadd.f32 %v668, %v710
        %v712 = vpop.f32.mrf.mxu0
        %v713 = vadd.f32 %v673, %v712
        %714 = vmatmul.bf16.gmra.mxu0 %v699
        %v715 = vpop.f32.mrf.mxu0
        %v716 = vadd.f32 %v678, %v715
        %v717 = vpop.f32.mrf.mxu0
        %v718 = vadd.f32 %v683, %v717
        %719 = vdwg.mxu0
        %v720 = vpack.c.bf16 %v711, %v711
        %v721 = vpack.c.bf16 %v713, %v713
        %v722 = vpack.c.bf16 %v716, %v716
        %v723 = vpack.c.bf16 %v718, %v718
        %724 = vst.msk [vmem:[%s469] sm:$0xf] %vm569, %v720
        %725 = vst.msk [vmem:[%s469 + $0x4] sm:$0xf] %vm569, %v721
        %726 = vst.msk [vmem:[%s469 + $0x8] sm:$0xf] %vm569, %v722
        %727 = vst.msk [vmem:[%s469 + $0xc] sm:$0xf] %vm569, %v723
        %s728 = sand.u32 %s261, 1
        %s729 = scalar_lea.sflag [#allocation3], %s728
        %s730 = sand.u32 %s261, 1
        %s731 = smul.addr %s730, 16
        %s732 = scalar_lea.vmem [#allocation2], %s731
        %s733 = sand.u32 %s29, 1
        %s734 = scalar_lea.sflag [#allocation5], %s733
        %s735 = sand.u32 %s289, 1
        %s736 = smul.addr %s735, 16
        %s737 = scalar_lea.vmem [#allocation4], %s736
        %s738 = sand.u32 %s29, 1
        %s739 = scalar_lea.sflag [#allocation5], %s738
        %s740 = sand.u32 %s317, 1
        %s741 = smul.addr %s740, 16
        %s742 = scalar_lea.vmem [#allocation6], %s741
        // Predicated region
        $region57: #{tpu_custom_call.1} parent=55 // pred_check
          %p743 = pneg %p271
        $region58: #{tpu_custom_call.1} parent=55 // pred_check_branch
          %745 = sbr.rel (%p743) target = $region60
        $region59: #{tpu_custom_call.1} parent=55 // pred_region
          %747 = vsyncadd %s729, 0
          %s748 = smul.addr %s33, 4
          %s749 = sadd.s32 %s34, %s748
          %s750 = smul.addr %s749, 4
          %s751 = scalar_lea.hbm %s9, %s750
          %s752 = sshll.u32 %s732, 4
          %s753 = int_to_ptr.vmem [resolvable:$true] %s752
          %s754 = sshll.u32 %s751, 4
          %s755 = int_to_ptr.hbm [resolvable:$true] %s754
          %760 = dma.vmem_to_hbm [thread:$0]  %s753, 256, %s755, %s729, 64, 64, 4
        $region60: #{tpu_custom_call.1} parent=55 // pred_fallthru
          _
        // Predicated region
        $region61: #{tpu_custom_call.1} parent=55 // pred_check
          %p761 = pneg %p299
        $region62: #{tpu_custom_call.1} parent=55 // pred_check_branch
          %763 = sbr.rel (%p761) target = $region64
        $region63: #{tpu_custom_call.1} parent=55 // pred_region
          %765 = vsyncadd %s734, 0
          %s766 = smul.addr %s33, 4
          %s767 = sadd.s32 %s34, %s766
          %s768 = smul.addr %s767, 4
          %s769 = scalar_lea.hbm %s10, %s768
          %s770 = sshll.u32 %s737, 4
          %s771 = int_to_ptr.vmem [resolvable:$true] %s770
          %s772 = sshll.u32 %s769, 4
          %s773 = int_to_ptr.hbm [resolvable:$true] %s772
          %778 = dma.vmem_to_hbm [thread:$0]  %s771, 256, %s773, %s734, 64, 64, 4
        $region64: #{tpu_custom_call.1} parent=55 // pred_fallthru
          _
        // Predicated region
        $region65: #{tpu_custom_call.1} parent=55 // pred_check
          %p779 = pneg %p327
        $region66: #{tpu_custom_call.1} parent=55 // pred_check_branch
          %781 = sbr.rel (%p779) target = $region68
        $region67: #{tpu_custom_call.1} parent=55 // pred_region
          %783 = vsyncadd %s739, 0
          %s784 = smul.addr %s33, 4
          %s785 = sadd.s32 %s34, %s784
          %s786 = smul.addr %s785, 4
          %s787 = scalar_lea.hbm %s11, %s786
          %s788 = sshll.u32 %s742, 4
          %s789 = int_to_ptr.vmem [resolvable:$true] %s788
          %s790 = sshll.u32 %s787, 4
          %s791 = int_to_ptr.hbm [resolvable:$true] %s790
          %796 = dma.vmem_to_hbm [thread:$0]  %s789, 256, %s791, %s739, 64, 64, 4
        $region68: #{tpu_custom_call.1} parent=55 // pred_fallthru
          _
      $region56: #{tpu_custom_call.1} parent=5 // pred_fallthru
        _
      %p797 = scmp.le.s32.totalorder 2, %s24
      // Predicated region
      $region69: #{tpu_custom_call.1} parent=5 // pred_check
        %p798 = pneg %p797
      $region70: #{tpu_custom_call.1} parent=5 // pred_check_branch
        %800 = sbr.rel (%p798) target = $region72
      $region71: #{tpu_custom_call.1} parent=5 // pred_region
        %s801 = ssub.s32 %s24, 2
        // Predicated region
        $region73: #{tpu_custom_call.1} parent=71 // pred_check
          %p802 = pneg %p277
        $region74: #{tpu_custom_call.1} parent=71 // pred_check_branch
          %804 = sbr.rel (%p802) target = $region76
        $region75: #{tpu_custom_call.1} parent=71 // pred_region
          %s805 = sand.u32 %s262, 1
          %s806 = scalar_lea.sflag [#allocation3], %s805
          %s807 = sand.u32 %s262, 1
          %s808 = smul.addr %s807, 16
          %s809 = scalar_lea.vmem [#allocation2], %s808
          %811 = dma.done %s806, 256
        $region76: #{tpu_custom_call.1} parent=71 // pred_fallthru
          _
        // Predicated region
        $region77: #{tpu_custom_call.1} parent=71 // pred_check
          %p812 = pneg %p305
        $region78: #{tpu_custom_call.1} parent=71 // pred_check_branch
          %814 = sbr.rel (%p812) target = $region80
        $region79: #{tpu_custom_call.1} parent=71 // pred_region
          %s815 = sand.u32 %s30, 1
          %s816 = scalar_lea.sflag [#allocation5], %s815
          %s817 = sand.u32 %s290, 1
          %s818 = smul.addr %s817, 16
          %s819 = scalar_lea.vmem [#allocation4], %s818
          %821 = dma.done %s816, 256
        $region80: #{tpu_custom_call.1} parent=71 // pred_fallthru
          _
        // Predicated region
        $region81: #{tpu_custom_call.1} parent=71 // pred_check
          %p822 = pneg %p333
        $region82: #{tpu_custom_call.1} parent=71 // pred_check_branch
          %824 = sbr.rel (%p822) target = $region84
        $region83: #{tpu_custom_call.1} parent=71 // pred_region
          %s825 = sand.u32 %s30, 1
          %s826 = scalar_lea.sflag [#allocation5], %s825
          %s827 = sand.u32 %s318, 1
          %s828 = smul.addr %s827, 16
          %s829 = scalar_lea.vmem [#allocation6], %s828
          %831 = dma.done %s826, 256
        $region84: #{tpu_custom_call.1} parent=71 // pred_fallthru
          _
      $region72: #{tpu_custom_call.1} parent=5 // pred_fallthru
        _
    $region6: #{tpu_custom_call.1} parent=1 // loop_footer
      %s28 = sadd.s32 1, %s24
    $region7: #{tpu_custom_call.1} parent=1 // loop_footer_branch
      %23 = sbr.rel target = $region3
    $region8: #{tpu_custom_call.1} parent=1 // loop_exit
      _
    %832 = vsyncpa [#allocation3], 1
    %s833 = scalar_lea.sflag [#allocation3], 1
    %834 = vsyncpa %s833, 1
    %835 = vsyncpa [#allocation5], 1
    %s836 = scalar_lea.sflag [#allocation5], 1
    %837 = vsyncpa %s836, 1

</llo_original>
